<compile_context>
chip_gen: v5e
topology: v5e:2x2
jax: 0.10.0
libtpu: 0.0.40
codegen_flags: <defaults>
</compile_context>

<pallas_src>
import jax
import jax.numpy as jnp
from jax.experimental import pallas as pl
from jax.experimental.pallas import tpu as pltpu


def _round_up(n, m):
    return ((n + m - 1) // m) * m


def _silu_f32(h):
    # SiLU in f32; the approximate reciprocal runs on the EUP slot (nearly free).
    return h * pl.reciprocal(1.0 + jnp.exp(-h), approx=True)


def categorical_encoder_kernel(x_ref, w1_ref, b1_ref, w2_ref, b2_ref,
                               w3_ref, b3_ref, p_ref):
    """Fused 3-layer MLP (SiLU hidden activations) + numerically-stable softmax.

    x / weights arrive in bf16; all accumulation and elementwise math is f32.
    """
    x = x_ref[...]  # [TB, in_dim] bf16

    # hidden layer 1 (bf16 matmul, f32 accumulate)
    h = jnp.dot(x, w1_ref[...], preferred_element_type=jnp.float32) + b1_ref[...]
    h = _silu_f32(h)

    # hidden layer 2
    h = jnp.dot(h.astype(jnp.bfloat16), w2_ref[...],
                preferred_element_type=jnp.float32) + b2_ref[...]
    h = _silu_f32(h)

    # output layer (no activation)
    logits = jnp.dot(h.astype(jnp.bfloat16), w3_ref[...],
                     preferred_element_type=jnp.float32) + b3_ref[...]

    # softmax over last dim (stable max-subtraction, EUP reciprocal for the divide)
    m = jnp.max(logits, axis=-1, keepdims=True)
    e = jnp.exp(logits - m)
    denom = jnp.sum(e, axis=-1, keepdims=True)
    p_ref[...] = (e * pl.reciprocal(denom, approx=True)).astype(p_ref.dtype)


def categorical_encoder_forward(x, params, *, tile_rows=512):
    """x: [B, input_dim] float32. Returns p: [B, output_dim] float32.

    tile_rows: batch tile size (rows per grid step). 512-2048 amortizes the
    per-step overhead while keeping per-tile VMEM tiny (weights ~29 KB resident).
    """
    w1, b1, w2, b2, w3, b3 = params
    B, in_dim = x.shape
    out_dim = w3.shape[1]

    # Batch tile: multiple of 16 (bf16 sublane packing). Small batches -> one tile.
    tb = min(_round_up(tile_rows, 16), _round_up(B, 16))
    b_pad = _round_up(B, tb)
    if b_pad != B:
        x = jnp.pad(x, ((0, b_pad - B), (0, 0)))

    # bf16 matmul operands; biases stay f32 (added post-accumulation).
    x_bf = x.astype(jnp.bfloat16)
    w1b = w1.astype(jnp.bfloat16)
    w2b = w2.astype(jnp.bfloat16)
    w3b = w3.astype(jnp.bfloat16)

    batch_map = lambda i: (i, 0)   # tile moves along batch
    const_map = lambda i: (0, 0)   # weights/biases resident across all grid steps

    # TODO(synk): if profiling shows store time in wall-compute, present a lane-dense
    # output (out_dim=16 -> masked 16/128-lane stores); gated on a profile for now.
    p = pl.pallas_call(
        categorical_encoder_kernel,
        out_shape=jax.ShapeDtypeStruct((b_pad, out_dim), jnp.float32),
        grid=(b_pad // tb,),
        in_specs=[
            pl.BlockSpec((tb, in_dim), batch_map),
            pl.BlockSpec(w1.shape, const_map),
            pl.BlockSpec(b1.shape, const_map),
            pl.BlockSpec(w2.shape, const_map),
            pl.BlockSpec(b2.shape, const_map),
            pl.BlockSpec(w3.shape, const_map),
            pl.BlockSpec(b3.shape, const_map),
        ],
        out_specs=pl.BlockSpec((tb, out_dim), batch_map),
        compiler_params=pltpu.CompilerParams(
            dimension_semantics=("parallel",),
        ),
    )(x_bf, w1b, b1, w2b, b2, w3b, b3)

    return p[:B]


def init_params(key, input_dim, output_dim, hidden_dims):
    """Deterministic init matching PyTorch Linear's U(-1/sqrt(fan_in), 1/sqrt(fan_in))."""
    dims = [input_dim] + list(hidden_dims) + [output_dim]
    params = []
    for i in range(len(dims) - 1):
        fan_in, fan_out = dims[i], dims[i + 1]
        key, kw, kb = jax.random.split(key, 3)
        bound = 1.0 / jnp.sqrt(float(fan_in))
        w = jax.random.uniform(kw, (fan_in, fan_out), jnp.float32, -bound, bound)
        b = jax.random.uniform(kb, (1, fan_out), jnp.float32, -bound, bound)
        params += [w, b]
    return tuple(params)


def reference_forward(x, params):
    w1, b1, w2, b2, w3, b3 = params
    h = jax.nn.silu(x @ w1 + b1)
    h = jax.nn.silu(h @ w2 + b2)
    logits = h @ w3 + b3
    return jax.nn.softmax(logits, axis=-1)


if __name__ == "__main__":
    # Small shapes consistent with the module: batch=8, input_dim=32,
    # hidden_dims=(64, 64), output_dim=16.
    key = jax.random.PRNGKey(0)
    key, kx, kx2 = jax.random.split(key, 3)

    B, input_dim, output_dim = 8, 32, 16
    hidden_dims = (64, 64)

    x = jax.random.normal(kx, (B, input_dim), jnp.float32)
    params = init_params(key, input_dim, output_dim, hidden_dims)

    p = categorical_encoder_forward(x, params)
    p = jax.block_until_ready(p)

    # correctness check against pure-JAX f32 reference
    # (bf16 matmul inputs + approx reciprocal => loosened tolerance)
    p_ref = reference_forward(x, params)
    assert p.shape == (B, output_dim)
    assert jnp.allclose(p, p_ref, atol=2e-2, rtol=2e-2)
    assert jnp.allclose(jnp.sum(p, axis=-1), 1.0, atol=5e-3)

    # exercise the multi-tile grid + batch-padding path (still small shapes)
    B2 = 50
    x2 = jax.random.normal(kx2, (B2, input_dim), jnp.float32)
    p2 = jax.block_until_ready(
        categorical_encoder_forward(x2, params, tile_rows=16))
    p2_ref = reference_forward(x2, params)
    assert p2.shape == (B2, output_dim)
    assert jnp.allclose(p2, p2_ref, atol=2e-2, rtol=2e-2)
    assert jnp.allclose(jnp.sum(p2, axis=-1), 1.0, atol=5e-3)

    # TODO(synk): `sample()` uses F.gumbel_softmax (stochastic, training-only path);
    # only the deterministic forward() is implemented here.
    print("KERNEL_OK")
</pallas_src>

<mosaic_0001>
module attributes {stable_mosaic.version = 11 : i64} {
  func.func @categorical_encoder_kernel(%arg0: i32, %arg1: memref<16x32xbf16, #tpu.memory_space<vmem>>, %arg2: memref<32x64xbf16, #tpu.memory_space<vmem>>, %arg3: memref<1x64xf32, #tpu.memory_space<vmem>>, %arg4: memref<64x64xbf16, #tpu.memory_space<vmem>>, %arg5: memref<1x64xf32, #tpu.memory_space<vmem>>, %arg6: memref<64x16xbf16, #tpu.memory_space<vmem>>, %arg7: memref<1x16xf32, #tpu.memory_space<vmem>>, %arg8: memref<16x16xf32, #tpu.memory_space<vmem>>) attributes {dimension_semantics = [#tpu.dimension_semantics<parallel>], iteration_bounds = array<i64: 1>, scalar_prefetch = 0 : i64, scratch_operands = 0 : i64, tpu.core_type = #tpu.core_type<tc>, window_params = [{transform_indices = @transform_0, window_bounds = array<i64: 16, 32>}, {pipeline_mode = #tpu.pipeline_mode<synchronous>, transform_indices = @transform_1, window_bounds = array<i64: 32, 64>}, {pipeline_mode = #tpu.pipeline_mode<synchronous>, transform_indices = @transform_2, window_bounds = array<i64: 1, 64>}, {pipeline_mode = #tpu.pipeline_mode<synchronous>, transform_indices = @transform_3, window_bounds = array<i64: 64, 64>}, {pipeline_mode = #tpu.pipeline_mode<synchronous>, transform_indices = @transform_4, window_bounds = array<i64: 1, 64>}, {pipeline_mode = #tpu.pipeline_mode<synchronous>, transform_indices = @transform_5, window_bounds = array<i64: 64, 16>}, {pipeline_mode = #tpu.pipeline_mode<synchronous>, transform_indices = @transform_6, window_bounds = array<i64: 1, 16>}, {transform_indices = @transform_7, window_bounds = array<i64: 16, 16>}]} {
    %c0 = arith.constant 0 : index
    %c0_0 = arith.constant 0 : index
    %0 = vector.load %arg1[%c0, %c0_0] : memref<16x32xbf16, #tpu.memory_space<vmem>>, vector<16x32xbf16>
    %c0_1 = arith.constant 0 : index
    %c0_2 = arith.constant 0 : index
    %1 = vector.load %arg2[%c0_1, %c0_2] : memref<32x64xbf16, #tpu.memory_space<vmem>>, vector<32x64xbf16>
    %cst = arith.constant dense<0.000000e+00> : vector<16x64xf32>
    %2 = tpu.matmul %0, %1, %cst {dimension_numbers = #tpu.dot_dimension_numbers<[1], [0], [0], [1], [0, 0, 1, 1], [], []>} : vector<16x32xbf16>, vector<32x64xbf16>, vector<16x64xf32> -> vector<16x64xf32>
    %c0_3 = arith.constant 0 : index
    %c0_4 = arith.constant 0 : index
    %3 = vector.load %arg3[%c0_3, %c0_4] : memref<1x64xf32, #tpu.memory_space<vmem>>, vector<1x64xf32>
    %4 = vector.broadcast %3 : vector<1x64xf32> to vector<16x64xf32>
    %5 = arith.addf %2, %4 : vector<16x64xf32>
    %cst_5 = arith.constant 0.000000e+00 : f32
    %6 = vector.broadcast %cst_5 : f32 to vector<16x64xf32>
    %7 = arith.subf %6, %5 : vector<16x64xf32>
    %8 = math.exp %7 : vector<16x64xf32>
    %cst_6 = arith.constant 1.000000e+00 : f32
    %9 = vector.broadcast %cst_6 : f32 to vector<16x64xf32>
    %10 = arith.addf %9, %8 : vector<16x64xf32>
    %11 = tpu.reciprocal %10 {approx = true} : vector<16x64xf32> -> vector<16x64xf32>
    %12 = arith.mulf %5, %11 : vector<16x64xf32>
    %13 = arith.truncf %12 : vector<16x64xf32> to vector<16x64xbf16>
    %c0_7 = arith.constant 0 : index
    %c0_8 = arith.constant 0 : index
    %14 = vector.load %arg4[%c0_7, %c0_8] : memref<64x64xbf16, #tpu.memory_space<vmem>>, vector<64x64xbf16>
    %cst_9 = arith.constant dense<0.000000e+00> : vector<16x64xf32>
    %15 = tpu.matmul %13, %14, %cst_9 {dimension_numbers = #tpu.dot_dimension_numbers<[1], [0], [0], [1], [0, 0, 1, 1], [], []>} : vector<16x64xbf16>, vector<64x64xbf16>, vector<16x64xf32> -> vector<16x64xf32>
    %c0_10 = arith.constant 0 : index
    %c0_11 = arith.constant 0 : index
    %16 = vector.load %arg5[%c0_10, %c0_11] : memref<1x64xf32, #tpu.memory_space<vmem>>, vector<1x64xf32>
    %17 = vector.broadcast %16 : vector<1x64xf32> to vector<16x64xf32>
    %18 = arith.addf %15, %17 : vector<16x64xf32>
    %cst_12 = arith.constant 0.000000e+00 : f32
    %19 = vector.broadcast %cst_12 : f32 to vector<16x64xf32>
    %20 = arith.subf %19, %18 : vector<16x64xf32>
    %21 = math.exp %20 : vector<16x64xf32>
    %cst_13 = arith.constant 1.000000e+00 : f32
    %22 = vector.broadcast %cst_13 : f32 to vector<16x64xf32>
    %23 = arith.addf %22, %21 : vector<16x64xf32>
    %24 = tpu.reciprocal %23 {approx = true} : vector<16x64xf32> -> vector<16x64xf32>
    %25 = arith.mulf %18, %24 : vector<16x64xf32>
    %26 = arith.truncf %25 : vector<16x64xf32> to vector<16x64xbf16>
    %c0_14 = arith.constant 0 : index
    %c0_15 = arith.constant 0 : index
    %27 = vector.load %arg6[%c0_14, %c0_15] : memref<64x16xbf16, #tpu.memory_space<vmem>>, vector<64x16xbf16>
    %cst_16 = arith.constant dense<0.000000e+00> : vector<16x16xf32>
    %28 = tpu.matmul %26, %27, %cst_16 {dimension_numbers = #tpu.dot_dimension_numbers<[1], [0], [0], [1], [0, 0, 1, 1], [], []>} : vector<16x64xbf16>, vector<64x16xbf16>, vector<16x16xf32> -> vector<16x16xf32>
    %c0_17 = arith.constant 0 : index
    %c0_18 = arith.constant 0 : index
    %29 = vector.load %arg7[%c0_17, %c0_18] : memref<1x16xf32, #tpu.memory_space<vmem>>, vector<1x16xf32>
    %30 = vector.broadcast %29 : vector<1x16xf32> to vector<16x16xf32>
    %31 = arith.addf %28, %30 : vector<16x16xf32>
    %cst_19 = arith.constant dense<0xFF800000> : vector<16xf32>
    %32 = vector.multi_reduction <maximumf>, %31, %cst_19 [1] : vector<16x16xf32> to vector<16xf32>
    %33 = vector.shape_cast %32 : vector<16xf32> to vector<16x1xf32>
    %34 = vector.broadcast %33 : vector<16x1xf32> to vector<16x16xf32>
    %35 = arith.subf %31, %34 : vector<16x16xf32>
    %36 = math.exp %35 : vector<16x16xf32>
    %cst_20 = arith.constant dense<0.000000e+00> : vector<16xf32>
    %37 = vector.multi_reduction <add>, %36, %cst_20 [1] : vector<16x16xf32> to vector<16xf32>
    %38 = vector.shape_cast %37 : vector<16xf32> to vector<16x1xf32>
    %39 = tpu.reciprocal %38 {approx = true} : vector<16x1xf32> -> vector<16x1xf32>
    %40 = vector.broadcast %39 : vector<16x1xf32> to vector<16x16xf32>
    %41 = arith.mulf %36, %40 : vector<16x16xf32>
    %c0_21 = arith.constant 0 : index
    %c0_22 = arith.constant 0 : index
    %42 = vector.load %arg8[%c0_21, %c0_22] : memref<16x16xf32, #tpu.memory_space<vmem>>, vector<16x16xf32>
    tpu.vector_store %arg8[%c0_21, %c0_22], %41 {strides = array<i32>} : memref<16x16xf32, #tpu.memory_space<vmem>>, vector<16x16xf32>,
    return
  }
  func.func @transform_0(%arg0: i32) -> (i32, i32) {
    %c0_i32 = arith.constant 0 : i32
    %c0_i32_0 = arith.constant 0 : i32
    return %arg0, %c0_i32 : i32, i32
  }
  func.func @transform_1(%arg0: i32) -> (i32, i32) {
    %c0_i32 = arith.constant 0 : i32
    %c0_i32_0 = arith.constant 0 : i32
    %c0_i32_1 = arith.constant 0 : i32
    return %c0_i32, %c0_i32_0 : i32, i32
  }
  func.func @transform_2(%arg0: i32) -> (i32, i32) {
    %c0_i32 = arith.constant 0 : i32
    %c0_i32_0 = arith.constant 0 : i32
    %c0_i32_1 = arith.constant 0 : i32
    return %c0_i32, %c0_i32_0 : i32, i32
  }
  func.func @transform_3(%arg0: i32) -> (i32, i32) {
    %c0_i32 = arith.constant 0 : i32
    %c0_i32_0 = arith.constant 0 : i32
    %c0_i32_1 = arith.constant 0 : i32
    return %c0_i32, %c0_i32_0 : i32, i32
  }
  func.func @transform_4(%arg0: i32) -> (i32, i32) {
    %c0_i32 = arith.constant 0 : i32
    %c0_i32_0 = arith.constant 0 : i32
    %c0_i32_1 = arith.constant 0 : i32
    return %c0_i32, %c0_i32_0 : i32, i32
  }
  func.func @transform_5(%arg0: i32) -> (i32, i32) {
    %c0_i32 = arith.constant 0 : i32
    %c0_i32_0 = arith.constant 0 : i32
    %c0_i32_1 = arith.constant 0 : i32
    return %c0_i32, %c0_i32_0 : i32, i32
  }
  func.func @transform_6(%arg0: i32) -> (i32, i32) {
    %c0_i32 = arith.constant 0 : i32
    %c0_i32_0 = arith.constant 0 : i32
    %c0_i32_1 = arith.constant 0 : i32
    return %c0_i32, %c0_i32_0 : i32, i32
  }
  func.func @transform_7(%arg0: i32) -> (i32, i32) {
    %c0_i32 = arith.constant 0 : i32
    %c0_i32_0 = arith.constant 0 : i32
    return %arg0, %c0_i32 : i32, i32
  }
}

</mosaic_0001>

<llo_original>
// kernel: tpu_custom_call.1
$region0: #{tpu_custom_call.1}
  #allocation0 [shape = 'u32[]', space=smem, size = 0x4, offset = 0x4, fixed_abs, tag = 'smem constant byte address 0x4 - core index']
  #allocation1 [shape = 'u32[72,128]{1,0:T(1,128)}', space=vmem, size = 0x9000, scoped, tag = 'internal scratch']
  %s0 = inlined_call_operand.vmem [shape: bf16[16,32], index: 0, kind: input, shape index: {}]
  %s1 = inlined_call_operand.hbm [shape: bf16[32,64], index: 1, kind: input, shape index: {}]
  %s2 = inlined_call_operand.vmem [shape: f32[1,64], index: 2, kind: input, shape index: {}]
  %s3 = inlined_call_operand.vmem [shape: bf16[64,64], index: 3, kind: input, shape index: {}]
  %s4 = inlined_call_operand.vmem [shape: f32[1,64], index: 4, kind: input, shape index: {}]
  %s5 = inlined_call_operand.vmem [shape: bf16[64,16], index: 5, kind: input, shape index: {}]
  %s6 = inlined_call_operand.vmem [shape: f32[1,16], index: 6, kind: input, shape index: {}]
  %s7 = inlined_call_operand.hbm [shape: f32[16,16], index: 7, kind: output, shape index: {}]
  %s8 = sld [smem:[#allocation0]]
  $region42: #{tpu_custom_call.1} parent=0
    _
  %s10 = ssub.s32 1, %s8
  %s11 = scalar_select 0, %s10, %s8
  $region1: #{tpu_custom_call.1} parent=0
    #allocation2 [shape = 'u8[8192]{0}', space=vmem, size = 0x2000, scoped, tag = 'input window, operand 1, single buffered']
    #allocation3 [shape = 's32[1]{0}', space=sflag, size = 0x4, scoped, tag = 'scoped memory for tpu_custom_call.1']
    #allocation4 [shape = 's32[1]{0}', space=sflag, size = 0x4, scoped, tag = 'scoped memory for tpu_custom_call.1']
    #allocation5 [shape = 'u8[8192]{0}', space=vmem, size = 0x2000, scoped, tag = 'output window, operand 0, single buffered']
    %12 = vsyncpa [#allocation3], 0
    %13 = vsyncpa [#allocation4], 0
    // Predicated region
    $region2: #{tpu_custom_call.1} parent=1 // pred_check
      _
    $region3: #{tpu_custom_call.1} parent=1 // pred_check_branch
      %15 = sbr.rel (0) target = $region5
    $region4: #{tpu_custom_call.1} parent=1 // pred_region
      _
    $region5: #{tpu_custom_call.1} parent=1 // pred_fallthru
      _
    // Predicated region
    $region6: #{tpu_custom_call.1} parent=1 // pred_check
      _
    $region7: #{tpu_custom_call.1} parent=1 // pred_check_branch
      %17 = sbr.rel (0) target = $region9
    $region8: #{tpu_custom_call.1} parent=1 // pred_region
      %19 = vsyncadd [#allocation3], 0
      %s20 = sshll.u32 %s1, 4
      %s21 = int_to_ptr.hbm [resolvable:$true] %s20
      %s22 = sshll.u32 [#allocation2], 4
      %s23 = int_to_ptr.vmem [resolvable:$true] %s22
      %28 = dma.hbm_to_vmem [thread:$0]  %s21, 256, %s23, [#allocation3], 64, 64, 4
    $region9: #{tpu_custom_call.1} parent=1 // pred_fallthru
      _
    // Predicated region
    $region10: #{tpu_custom_call.1} parent=1 // pred_check
      _
    $region11: #{tpu_custom_call.1} parent=1 // pred_check_branch
      %30 = sbr.rel (0) target = $region13
    $region12: #{tpu_custom_call.1} parent=1 // pred_region
      _
    $region13: #{tpu_custom_call.1} parent=1 // pred_fallthru
      _
    // Predicated region
    $region14: #{tpu_custom_call.1} parent=1 // pred_check
      _
    $region15: #{tpu_custom_call.1} parent=1 // pred_check_branch
      %32 = sbr.rel (0) target = $region17
    $region16: #{tpu_custom_call.1} parent=1 // pred_region
      _
    $region17: #{tpu_custom_call.1} parent=1 // pred_fallthru
      _
    // Predicated region
    $region18: #{tpu_custom_call.1} parent=1 // pred_check
      _
    $region19: #{tpu_custom_call.1} parent=1 // pred_check_branch
      %34 = sbr.rel (0) target = $region21
    $region20: #{tpu_custom_call.1} parent=1 // pred_region
      _
    $region21: #{tpu_custom_call.1} parent=1 // pred_fallthru
      _
    // Predicated region
    $region22: #{tpu_custom_call.1} parent=1 // pred_check
      _
    $region23: #{tpu_custom_call.1} parent=1 // pred_check_branch
      %36 = sbr.rel (0) target = $region25
    $region24: #{tpu_custom_call.1} parent=1 // pred_region
      _
    $region25: #{tpu_custom_call.1} parent=1 // pred_fallthru
      _
    // Predicated region
    $region26: #{tpu_custom_call.1} parent=1 // pred_check
      _
    $region27: #{tpu_custom_call.1} parent=1 // pred_check_branch
      %38 = sbr.rel (0) target = $region29
    $region28: #{tpu_custom_call.1} parent=1 // pred_region
      _
    $region29: #{tpu_custom_call.1} parent=1 // pred_fallthru
      _
    // Predicated region
    $region30: #{tpu_custom_call.1} parent=1 // pred_check
      _
    $region31: #{tpu_custom_call.1} parent=1 // pred_check_branch
      %40 = sbr.rel (0) target = $region33
    $region32: #{tpu_custom_call.1} parent=1 // pred_region
      %42 = dma.done [#allocation3], 256
    $region33: #{tpu_custom_call.1} parent=1 // pred_fallthru
      _
    %v44 = vld [vmem:[%s0] sm:$0xf]
    %v45 = vld [vmem:[%s0 + $0x4] sm:$0xf]
    %v46 = vld [vmem:[#allocation2] sm:$0xf]
    %v47 = vld [vmem:[#allocation2 + $0x4] sm:$0xf]
    %v48 = vld [vmem:[#allocation2 + $0x8] sm:$0xf]
    %v49 = vld [vmem:[#allocation2 + $0xc] sm:$0xf]
    %v50 = vld [vmem:[%s2] sm:$0x1]
    %v52 = vperm.slane %v50, 0
    %v56 = vunpack.c.l.b16 %v44
    %v57 = vunpack.c.l.b16 %v45
    %v58 = vpack.c.b16 %v57, %v56
    %v63 = vunpack.c.l.b16 %v46
    %v64 = vunpack.c.l.b16 %v47
    %v65 = vunpack.c.l.b16 %v48
    %v66 = vunpack.c.l.b16 %v49
    %v67 = vpack.c.b16 %v64, %v63
    %v68 = vpack.c.b16 %v66, %v65
    %vm71 = vcmask 261120
    %v73 = vsel %vm71, %v58, 0
    %75 = vmatpush.bf16.msra.mxu0 0
    %76 = vmatpush.bf16.msra.mxu0 0
    %77 = vmatpush.bf16.msra.mxu0 0
    %78 = vmatpush.bf16.msra.mxu0 0
    %79 = vmatpush.bf16.msra.mxu0 0
    %80 = vmatpush.bf16.msra.mxu0 0
    %81 = vmatpush.bf16.msra.mxu0 %v68
    %82 = vmatpush.bf16.msra.mxu0 %v67
    %83 = vmatmul.bf16.gmra.mxu0 %v73
    %v84 = vpop.f32.mrf.mxu0
    %v85 = vadd.f32 %v52, %v84
    %v86 = vpop.f32.mrf.mxu0
    %v87 = vadd.f32 %v52, %v86
    %88 = vdwg.mxu0
    %v89 = vsub.f32 0.0, %v85
    %v90 = vsub.f32 0.0, %v87
    %v91 = vmul.f32 %v89, 1.442695
    %v92 = vpow.pop %v91
    %v93 = vmul.f32 %v90, 1.442695
    %v94 = vpow.pop %v93
    %v95 = vadd.f32 %v92, 1.0
    %v96 = vadd.f32 %v94, 1.0
    %v97 = vrcp.pop %v95
    %v98 = vrcp.pop %v96
    %v99 = vmul.f32 %v85, %v97
    %v100 = vmul.f32 %v87, %v98
    %v101 = vpack.c.bf16 %v100, %v99
    %v102 = vld [vmem:[%s3] sm:$0xf]
    %v103 = vld [vmem:[%s3 + $0x4] sm:$0xf]
    %v104 = vld [vmem:[%s3 + $0x8] sm:$0xf]
    %v105 = vld [vmem:[%s3 + $0xc] sm:$0xf]
    %v106 = vld [vmem:[%s3 + $0x10] sm:$0xf]
    %v107 = vld [vmem:[%s3 + $0x14] sm:$0xf]
    %v108 = vld [vmem:[%s3 + $0x18] sm:$0xf]
    %v109 = vld [vmem:[%s3 + $0x1c] sm:$0xf]
    %v110 = vld [vmem:[%s4] sm:$0x1]
    %v112 = vperm.slane %v110, 0
    %v122 = vunpack.c.l.b16 %v102
    %v123 = vunpack.c.l.b16 %v103
    %v124 = vunpack.c.l.b16 %v104
    %v125 = vunpack.c.l.b16 %v105
    %v126 = vunpack.c.l.b16 %v106
    %v127 = vunpack.c.l.b16 %v107
    %v128 = vunpack.c.l.b16 %v108
    %v129 = vunpack.c.l.b16 %v109
    %v130 = vpack.c.b16 %v123, %v122
    %v131 = vpack.c.b16 %v125, %v124
    %v132 = vpack.c.b16 %v127, %v126
    %v133 = vpack.c.b16 %v129, %v128
    %vm138 = vcmask 523264
    %v140 = vsel %vm138, %v101, 0
    %142 = vmatpush.bf16.msra.mxu0 0
    %143 = vmatpush.bf16.msra.mxu0 0
    %144 = vmatpush.bf16.msra.mxu0 0
    %145 = vmatpush.bf16.msra.mxu0 0
    %146 = vmatpush.bf16.msra.mxu0 %v133
    %147 = vmatpush.bf16.msra.mxu0 %v132
    %148 = vmatpush.bf16.msra.mxu0 %v131
    %149 = vmatpush.bf16.msra.mxu0 %v130
    %150 = vmatmul.bf16.gmra.mxu0 %v140
    %v151 = vpop.f32.mrf.mxu0
    %v152 = vadd.f32 %v112, %v151
    %v153 = vpop.f32.mrf.mxu0
    %v154 = vadd.f32 %v112, %v153
    %155 = vdwg.mxu0
    %v156 = vsub.f32 0.0, %v152
    %v157 = vsub.f32 0.0, %v154
    %v158 = vmul.f32 %v156, 1.442695
    %v159 = vpow.pop %v158
    %v160 = vmul.f32 %v157, 1.442695
    %v161 = vpow.pop %v160
    %v162 = vadd.f32 %v159, 1.0
    %v163 = vadd.f32 %v161, 1.0
    %v164 = vrcp.pop %v162
    %v165 = vrcp.pop %v163
    %v166 = vmul.f32 %v152, %v164
    %v167 = vmul.f32 %v154, %v165
    %v168 = vpack.c.bf16 %v167, %v166
    %v169 = vld [vmem:[%s5] sm:$0xf]
    %v170 = vld [vmem:[%s5 + $0x4] sm:$0xf]
    %v171 = vld [vmem:[%s5 + $0x8] sm:$0xf]
    %v172 = vld [vmem:[%s5 + $0xc] sm:$0xf]
    %v173 = vld [vmem:[%s5 + $0x10] sm:$0xf]
    %v174 = vld [vmem:[%s5 + $0x14] sm:$0xf]
    %v175 = vld [vmem:[%s5 + $0x18] sm:$0xf]
    %v176 = vld [vmem:[%s5 + $0x1c] sm:$0xf]
    %v177 = vld [vmem:[%s6] sm:$0x1]
    %v179 = vperm.slane %v177, 0
    %v189 = vunpack.c.l.b16 %v169
    %v190 = vunpack.c.l.b16 %v170
    %v191 = vunpack.c.l.b16 %v171
    %v192 = vunpack.c.l.b16 %v172
    %v193 = vunpack.c.l.b16 %v173
    %v194 = vunpack.c.l.b16 %v174
    %v195 = vunpack.c.l.b16 %v175
    %v196 = vunpack.c.l.b16 %v176
    %v197 = vpack.c.b16 %v190, %v189
    %v198 = vpack.c.b16 %v192, %v191
    %v199 = vpack.c.b16 %v194, %v193
    %v200 = vpack.c.b16 %v196, %v195
    %v206 = vsel %vm138, %v168, 0
    %208 = vmatpush.bf16.msra.mxu0 0
    %209 = vmatpush.bf16.msra.mxu0 0
    %210 = vmatpush.bf16.msra.mxu0 0
    %211 = vmatpush.bf16.msra.mxu0 0
    %212 = vmatpush.bf16.msra.mxu0 %v200
    %213 = vmatpush.bf16.msra.mxu0 %v199
    %214 = vmatpush.bf16.msra.mxu0 %v198
    %215 = vmatpush.bf16.msra.mxu0 %v197
    %216 = vmatmul.bf16.gmra.mxu0 %v206
    %v217 = vpop.f32.mrf.mxu0
    %v218 = vadd.f32 %v179, %v217
    %v219 = vpop.f32.mrf.mxu0
    %v220 = vadd.f32 %v179, %v219
    %221 = vdwg.mxu0
    %vm222 = vcmask 130048
    %v223 = vsel %vm222, %v218, -inf
    %224 = vmax.xlane.f32.xlu0 %v223
    %v225 = vpop.xlane.xlu0 %224
    %v226 = vsel %vm222, %v220, -inf
    %227 = vmax.xlane.f32.xlu0 %v226
    %v228 = vpop.xlane.xlu0 %227
    %v229 = vsub.f32 %v218, %v225
    %v230 = vsub.f32 %v220, %v228
    %v231 = vmul.f32 %v229, 1.442695
    %v232 = vpow.pop %v231
    %v233 = vmul.f32 %v230, 1.442695
    %v234 = vpow.pop %v233
    %v235 = vsel %vm222, %v232, 0.0
    %236 = vadd.xlane.f32.xlu0 %v235
    %v237 = vpop.xlane.xlu0 %236
    %v238 = vsel %vm222, %v234, 0.0
    %239 = vadd.xlane.f32.xlu0 %v238
    %v240 = vpop.xlane.xlu0 %239
    %v241 = vrcp.pop %v237
    %v242 = vrcp.pop %v240
    %v243 = vmul.f32 %v232, %v241
    %v244 = vmul.f32 %v234, %v242
    %245 = vst.msk [vmem:[#allocation5] sm:$0xff] %vm222, %v243
    %246 = vst.msk [vmem:[#allocation5 + $0x8] sm:$0xff] %vm222, %v244
    // Predicated region
    $region34: #{tpu_custom_call.1} parent=1 // pred_check
      _
    $region35: #{tpu_custom_call.1} parent=1 // pred_check_branch
      %248 = sbr.rel (0) target = $region37
    $region36: #{tpu_custom_call.1} parent=1 // pred_region
      %250 = vsyncadd [#allocation4], 0
      %s251 = sshll.u32 [#allocation5], 4
      %s252 = int_to_ptr.vmem [resolvable:$true] %s251
      %s253 = sshll.u32 %s7, 4
      %s254 = int_to_ptr.hbm [resolvable:$true] %s253
      %259 = dma.vmem_to_hbm [thread:$0]  %s252, 256, %s254, [#allocation4], 128, 128, 8
    $region37: #{tpu_custom_call.1} parent=1 // pred_fallthru
      _
    // Predicated region
    $region38: #{tpu_custom_call.1} parent=1 // pred_check
      _
    $region39: #{tpu_custom_call.1} parent=1 // pred_check_branch
      %261 = sbr.rel (0) target = $region41
    $region40: #{tpu_custom_call.1} parent=1 // pred_region
      %263 = dma.done [#allocation4], 256
    $region41: #{tpu_custom_call.1} parent=1 // pred_fallthru
      _
    %264 = vsyncpa [#allocation3], 1
    %265 = vsyncpa [#allocation4], 1

</llo_original>
